<compile_context>
chip_gen: v6e
topology: v6e:2x2x1
jax: 0.10.0
libtpu: 0.0.40
codegen_flags: <defaults>
</compile_context>

<pallas_src>
import functools

import jax
import jax.numpy as jnp
from jax.experimental import pallas as pl
from jax.experimental.pallas import tpu as pltpu

HIDDEN = 256
LANE = 128
SUBLANE_BF16 = 16   # bf16 sublane packing -> round batch tiles to 16 rows
MIN_TILES = 2       # keep both v7x TensorCores busy


def _round_up(x, m):
    return (x + m - 1) // m * m


def _cdiv(a, b):
    return (a + b - 1) // b


def qnet_kernel(x_ref, w1_ref, b1_ref, w2_ref, b2_ref, w3_ref, b3_ref, o_ref):
    # x arrives f32; cast to bf16 on the VPU (free) for the bf16 MXU path.
    x = x_ref[...].astype(jnp.bfloat16)

    # fc1: bf16 x bf16 on the MXU, f32 accumulate; bias/ReLU in f32 on the VPU.
    h1 = jnp.dot(x, w1_ref[...], preferred_element_type=jnp.float32)
    h1 = jnp.maximum(h1 + b1_ref[...], 0.0).astype(jnp.bfloat16)

    # fc2 (the only "real" MXU work at these sizes).
    h2 = jnp.dot(h1, w2_ref[...], preferred_element_type=jnp.float32)
    h2 = jnp.maximum(h2 + b2_ref[...], 0.0).astype(jnp.bfloat16)

    # fc3: w3 is lane-padded to 128 for the MXU; store only the real columns.
    out = jnp.dot(h2, w3_ref[...], preferred_element_type=jnp.float32)
    out = out + b3_ref[...]
    n_actions = o_ref.shape[1]
    o_ref[...] = out[:, :n_actions].astype(o_ref.dtype)


@functools.partial(jax.jit, static_argnames=("tm",))
def qnet_forward(x, params, *, tm=2048):
    """x: [B, states] float32.  params: dict of w1,b1,w2,b2,w3,b3 (f32, natural shapes)."""
    w1, b1, w2, b2, w3, b3 = (params[k] for k in ("w1", "b1", "w2", "b2", "w3", "b3"))
    B, S = x.shape
    H = w1.shape[1]
    A = w3.shape[1]

    # ---- wrapper-side layout prep (all cheap, fused under jit) -------------
    # bf16 weights -> half the HBM->VMEM weight bytes + native bf16 MXU.
    w1b = w1.astype(jnp.bfloat16)
    w2b = w2.astype(jnp.bfloat16)

    # Lane-dense RHS for fc3: pad actions up to 128 lanes (zero columns); the
    # kernel stores only the first A columns, so the OUTPUT is not padded.
    A_pad = _round_up(max(A, LANE), LANE)
    w3b = jnp.pad(w3, ((0, 0), (0, A_pad - A))).astype(jnp.bfloat16)
    b3p = jnp.pad(b3, ((0, 0), (0, A_pad - A))).astype(jnp.float32)
    b1f = b1.astype(jnp.float32)
    b2f = b2.astype(jnp.float32)

    # Batch tiling: choose the tile COUNT first (>= 2, even, for v7x megacore
    # balance), then size tiles as a 16-row multiple to minimize padding.
    tm_req = _round_up(max(int(tm), SUBLANE_BF16), SUBLANE_BF16)
    n_tiles = max(MIN_TILES, _cdiv(B, tm_req))
    n_tiles += n_tiles % 2                       # even tile count
    tm_eff = _round_up(_cdiv(B, n_tiles), SUBLANE_BF16)
    B_pad = n_tiles * tm_eff
    x_in = jnp.pad(x, ((0, B_pad - B), (0, 0))) if B_pad != B else x

    tiled = lambda shape: pl.BlockSpec(shape, lambda i: (i, 0))
    resident = lambda shape: pl.BlockSpec(shape, lambda i: (0, 0))

    # Advisory cost estimate for XLA's scheduler.
    flops = 2 * B_pad * (S * H + H * H + H * A_pad)
    bytes_accessed = (
        B_pad * S * 4
        + (w1b.size + w2b.size + w3b.size) * 2
        + (b1f.size + b2f.size + b3p.size) * 4
        + B_pad * A * 4
    )

    # Per-tile VMEM footprint: double-buffered x/out blocks, resident
    # (double-buffered) weights/biases, f32 + bf16 intermediates, fc3 f32 tile.
    vmem_est = (
        2 * (tm_eff * S * 4 + tm_eff * A * 4)                      # x / out buffers
        + 2 * ((w1b.size + w2b.size + w3b.size) * 2
               + (b1f.size + b2f.size + b3p.size) * 4)             # weights/biases
        + 2 * tm_eff * H * 4 + 2 * tm_eff * H * 2                  # h1/h2 f32 + bf16
        + tm_eff * A_pad * 4                                       # fc3 result tile
    )
    vmem_limit = int(min(48 * 1024 * 1024, max(16 * 1024 * 1024, 2 * vmem_est)))

    out = pl.pallas_call(
        qnet_kernel,
        out_shape=jax.ShapeDtypeStruct((B_pad, A), jnp.float32),
        grid=(n_tiles,),
        in_specs=[
            tiled((tm_eff, S)),
            resident((S, H)), resident((1, H)),
            resident((H, H)), resident((1, H)),
            resident((H, A_pad)), resident((1, A_pad)),
        ],
        out_specs=tiled((tm_eff, A)),
        compiler_params=pltpu.CompilerParams(
            # TODO(synk): try pltpu.CORE_PARALLEL here on v7x once validated.
            dimension_semantics=("parallel",),
            vmem_limit_bytes=vmem_limit,
        ),
        cost_estimate=pl.CostEstimate(
            flops=flops, transcendentals=0, bytes_accessed=bytes_accessed),
    )(x_in, w1b, b1f, w2b, b2f, w3b, b3p)

    return out[:B]


def init_qnet_params(key, states=4, actions=2, hidden=HIDDEN):
    """Deterministic synthetic init (PyTorch-Linear-style uniform bounds), f32."""
    ks = jax.random.split(key, 6)

    def linear(kw, kb, fan_in, fan_out):
        bound = 1.0 / jnp.sqrt(jnp.float32(fan_in))
        w = jax.random.uniform(kw, (fan_in, fan_out), jnp.float32, -bound, bound)
        # biases kept 2D [1, out] for TPU-friendly broadcasting inside the kernel
        b = jax.random.uniform(kb, (1, fan_out), jnp.float32, -bound, bound)
        return w, b

    w1, b1 = linear(ks[0], ks[1], states, hidden)
    w2, b2 = linear(ks[2], ks[3], hidden, hidden)
    w3, b3 = linear(ks[4], ks[5], hidden, actions)
    return {"w1": w1, "b1": b1, "w2": w2, "b2": b2, "w3": w3, "b3": b3}


def qnet_reference(x, p):
    """Pure-JAX reference mimicking the kernel's bf16-weight / f32-accumulate path.

    Note: bf16 weights deliberately change numerics vs the f32 PyTorch Qnet;
    tolerance below reflects that (acceptable for RL Q-values).
    """
    bf = jnp.bfloat16
    h1 = jnp.dot(x.astype(bf), p["w1"].astype(bf), preferred_element_type=jnp.float32)
    h1 = jnp.maximum(h1 + p["b1"], 0.0).astype(bf)
    h2 = jnp.dot(h1, p["w2"].astype(bf), preferred_element_type=jnp.float32)
    h2 = jnp.maximum(h2 + p["b2"], 0.0).astype(bf)
    out = jnp.dot(h2, p["w3"].astype(bf), preferred_element_type=jnp.float32)
    return out + p["b3"]


if __name__ == "__main__":
    key = jax.random.PRNGKey(0)
    k_x, k_p = jax.random.split(key)

    batch, states, actions = 8, 4, 2
    x = jax.random.normal(k_x, (batch, states), jnp.float32)
    params = init_qnet_params(k_p, states=states, actions=actions)

    # small-batch path (2 tiny tiles, exercises row padding + real-width output)
    out = jax.block_until_ready(qnet_forward(x, params))
    ref = qnet_reference(x, params)
    assert out.shape == (batch, actions)
    assert jnp.allclose(out, ref, atol=2e-2, rtol=2e-2), "small-batch mismatch"

    # multi-tile path: ragged batch exercises the even-tile-count rebalancing
    # (B=300, tm=128 -> 4 tiles of 80 rows) and the parallel batch axis.
    x2 = jax.random.normal(k_x, (300, states), jnp.float32)
    out2 = jax.block_until_ready(qnet_forward(x2, params, tm=128))
    ref2 = qnet_reference(x2, params)
    assert out2.shape == (300, actions)
    assert jnp.allclose(out2, ref2, atol=2e-2, rtol=2e-2), "multi-tile mismatch"

    print("KERNEL_OK")
</pallas_src>

<mosaic_0001>
module attributes {stable_mosaic.version = 11 : i64} {
  func.func @qnet_kernel(%arg0: i32, %arg1: memref<16x4xf32, #tpu.memory_space<vmem>>, %arg2: memref<4x256xbf16, #tpu.memory_space<vmem>>, %arg3: memref<1x256xf32, #tpu.memory_space<vmem>>, %arg4: memref<256x256xbf16, #tpu.memory_space<vmem>>, %arg5: memref<1x256xf32, #tpu.memory_space<vmem>>, %arg6: memref<256x128xbf16, #tpu.memory_space<vmem>>, %arg7: memref<1x128xf32, #tpu.memory_space<vmem>>, %arg8: memref<16x2xf32, #tpu.memory_space<vmem>>) attributes {dimension_semantics = [#tpu.dimension_semantics<parallel>], iteration_bounds = array<i64: 2>, scalar_prefetch = 0 : i64, scratch_operands = 0 : i64, tpu.core_type = #tpu.core_type<tc>, window_params = [{transform_indices = @transform_0, window_bounds = array<i64: 16, 4>}, {pipeline_mode = #tpu.pipeline_mode<synchronous>, transform_indices = @transform_1, window_bounds = array<i64: 4, 256>}, {pipeline_mode = #tpu.pipeline_mode<synchronous>, transform_indices = @transform_2, window_bounds = array<i64: 1, 256>}, {pipeline_mode = #tpu.pipeline_mode<synchronous>, transform_indices = @transform_3, window_bounds = array<i64: 256, 256>}, {pipeline_mode = #tpu.pipeline_mode<synchronous>, transform_indices = @transform_4, window_bounds = array<i64: 1, 256>}, {pipeline_mode = #tpu.pipeline_mode<synchronous>, transform_indices = @transform_5, window_bounds = array<i64: 256, 128>}, {pipeline_mode = #tpu.pipeline_mode<synchronous>, transform_indices = @transform_6, window_bounds = array<i64: 1, 128>}, {transform_indices = @transform_7, window_bounds = array<i64: 16, 2>}]} {
    %c0 = arith.constant 0 : index
    %c0_0 = arith.constant 0 : index
    %0 = vector.load %arg1[%c0, %c0_0] : memref<16x4xf32, #tpu.memory_space<vmem>>, vector<16x4xf32>
    %1 = arith.truncf %0 : vector<16x4xf32> to vector<16x4xbf16>
    %c0_1 = arith.constant 0 : index
    %c0_2 = arith.constant 0 : index
    %2 = vector.load %arg2[%c0_1, %c0_2] : memref<4x256xbf16, #tpu.memory_space<vmem>>, vector<4x256xbf16>
    %cst = arith.constant dense<0.000000e+00> : vector<16x256xf32>
    %3 = tpu.matmul %1, %2, %cst {dimension_numbers = #tpu.dot_dimension_numbers<[1], [0], [0], [1], [0, 0, 1, 1], [], []>} : vector<16x4xbf16>, vector<4x256xbf16>, vector<16x256xf32> -> vector<16x256xf32>
    %c0_3 = arith.constant 0 : index
    %c0_4 = arith.constant 0 : index
    %4 = vector.load %arg3[%c0_3, %c0_4] : memref<1x256xf32, #tpu.memory_space<vmem>>, vector<1x256xf32>
    %5 = vector.broadcast %4 : vector<1x256xf32> to vector<16x256xf32>
    %6 = arith.addf %3, %5 : vector<16x256xf32>
    %cst_5 = arith.constant 0.000000e+00 : f32
    %7 = vector.broadcast %cst_5 : f32 to vector<16x256xf32>
    %8 = arith.maximumf %6, %7 : vector<16x256xf32>
    %9 = arith.truncf %8 : vector<16x256xf32> to vector<16x256xbf16>
    %c0_6 = arith.constant 0 : index
    %c0_7 = arith.constant 0 : index
    %10 = vector.load %arg4[%c0_6, %c0_7] : memref<256x256xbf16, #tpu.memory_space<vmem>>, vector<256x256xbf16>
    %cst_8 = arith.constant dense<0.000000e+00> : vector<16x256xf32>
    %11 = tpu.matmul %9, %10, %cst_8 {dimension_numbers = #tpu.dot_dimension_numbers<[1], [0], [0], [1], [0, 0, 1, 1], [], []>} : vector<16x256xbf16>, vector<256x256xbf16>, vector<16x256xf32> -> vector<16x256xf32>
    %c0_9 = arith.constant 0 : index
    %c0_10 = arith.constant 0 : index
    %12 = vector.load %arg5[%c0_9, %c0_10] : memref<1x256xf32, #tpu.memory_space<vmem>>, vector<1x256xf32>
    %13 = vector.broadcast %12 : vector<1x256xf32> to vector<16x256xf32>
    %14 = arith.addf %11, %13 : vector<16x256xf32>
    %cst_11 = arith.constant 0.000000e+00 : f32
    %15 = vector.broadcast %cst_11 : f32 to vector<16x256xf32>
    %16 = arith.maximumf %14, %15 : vector<16x256xf32>
    %17 = arith.truncf %16 : vector<16x256xf32> to vector<16x256xbf16>
    %c0_12 = arith.constant 0 : index
    %c0_13 = arith.constant 0 : index
    %18 = vector.load %arg6[%c0_12, %c0_13] : memref<256x128xbf16, #tpu.memory_space<vmem>>, vector<256x128xbf16>
    %cst_14 = arith.constant dense<0.000000e+00> : vector<16x128xf32>
    %19 = tpu.matmul %17, %18, %cst_14 {dimension_numbers = #tpu.dot_dimension_numbers<[1], [0], [0], [1], [0, 0, 1, 1], [], []>} : vector<16x256xbf16>, vector<256x128xbf16>, vector<16x128xf32> -> vector<16x128xf32>
    %c0_15 = arith.constant 0 : index
    %c0_16 = arith.constant 0 : index
    %20 = vector.load %arg7[%c0_15, %c0_16] : memref<1x128xf32, #tpu.memory_space<vmem>>, vector<1x128xf32>
    %21 = vector.broadcast %20 : vector<1x128xf32> to vector<16x128xf32>
    %22 = arith.addf %19, %21 : vector<16x128xf32>
    %23 = vector.extract_strided_slice %22 {offsets = [0, 0], sizes = [16, 2], strides = [1, 1]} : vector<16x128xf32> to vector<16x2xf32>
    %c0_17 = arith.constant 0 : index
    %c0_18 = arith.constant 0 : index
    %24 = vector.load %arg8[%c0_17, %c0_18] : memref<16x2xf32, #tpu.memory_space<vmem>>, vector<16x2xf32>
    tpu.vector_store %arg8[%c0_17, %c0_18], %23 {strides = array<i32>} : memref<16x2xf32, #tpu.memory_space<vmem>>, vector<16x2xf32>,
    return
  }
  func.func @transform_0(%arg0: i32) -> (i32, i32) {
    %c0_i32 = arith.constant 0 : i32
    %c0_i32_0 = arith.constant 0 : i32
    return %arg0, %c0_i32 : i32, i32
  }
  func.func @transform_1(%arg0: i32) -> (i32, i32) {
    %c0_i32 = arith.constant 0 : i32
    %c0_i32_0 = arith.constant 0 : i32
    %c0_i32_1 = arith.constant 0 : i32
    return %c0_i32, %c0_i32_0 : i32, i32
  }
  func.func @transform_2(%arg0: i32) -> (i32, i32) {
    %c0_i32 = arith.constant 0 : i32
    %c0_i32_0 = arith.constant 0 : i32
    %c0_i32_1 = arith.constant 0 : i32
    return %c0_i32, %c0_i32_0 : i32, i32
  }
  func.func @transform_3(%arg0: i32) -> (i32, i32) {
    %c0_i32 = arith.constant 0 : i32
    %c0_i32_0 = arith.constant 0 : i32
    %c0_i32_1 = arith.constant 0 : i32
    return %c0_i32, %c0_i32_0 : i32, i32
  }
  func.func @transform_4(%arg0: i32) -> (i32, i32) {
    %c0_i32 = arith.constant 0 : i32
    %c0_i32_0 = arith.constant 0 : i32
    %c0_i32_1 = arith.constant 0 : i32
    return %c0_i32, %c0_i32_0 : i32, i32
  }
  func.func @transform_5(%arg0: i32) -> (i32, i32) {
    %c0_i32 = arith.constant 0 : i32
    %c0_i32_0 = arith.constant 0 : i32
    %c0_i32_1 = arith.constant 0 : i32
    return %c0_i32, %c0_i32_0 : i32, i32
  }
  func.func @transform_6(%arg0: i32) -> (i32, i32) {
    %c0_i32 = arith.constant 0 : i32
    %c0_i32_0 = arith.constant 0 : i32
    %c0_i32_1 = arith.constant 0 : i32
    return %c0_i32, %c0_i32_0 : i32, i32
  }
  func.func @transform_7(%arg0: i32) -> (i32, i32) {
    %c0_i32 = arith.constant 0 : i32
    %c0_i32_0 = arith.constant 0 : i32
    return %arg0, %c0_i32 : i32, i32
  }
}

</mosaic_0001>

<llo_original>
// kernel: qnet_forward.1
$region0: #{qnet_forward.1}
  #allocation0 [shape = 'u32[]', space=smem, size = 0x4, offset = 0x4, fixed_abs, tag = 'smem constant byte address 0x4 - core index']
  #allocation1 [shape = 'u32[144,128]{1,0:T(1,128)}', space=vmem, size = 0x12000, scoped, tag = 'internal scratch']
  %s0 = inlined_call_operand.vmem [shape: f32[32,4], index: 0, kind: input, shape index: {}]
  %s1 = inlined_call_operand.vmem [shape: bf16[4,256], index: 1, kind: input, shape index: {}]
  %s2 = inlined_call_operand.vmem [shape: f32[1,256], index: 2, kind: input, shape index: {}]
  %s3 = inlined_call_operand.vmem [shape: bf16[256,256], index: 3, kind: input, shape index: {}]
  %s4 = inlined_call_operand.vmem [shape: f32[1,256], index: 4, kind: input, shape index: {}]
  %s5 = inlined_call_operand.vmem [shape: bf16[256,128], index: 5, kind: input, shape index: {}]
  %s6 = inlined_call_operand.vmem [shape: f32[1,128], index: 6, kind: input, shape index: {}]
  %s7 = inlined_call_operand.vmem [shape: f32[32,2], index: 7, kind: output, shape index: {}]
  %s8 = sld [smem:[#allocation0]]
  $region61: #{qnet_forward.1} parent=0
    _
  %s10 = ssub.s32 1, %s8
  %s11 = scalar_select 0, %s10, %s8
  loop: start=0, step=1, limit=4
  $region2: #{qnet_forward.1} parent=0 // loop_pre_header
    _
  $region3: #{qnet_forward.1} parent=0 // loop_header
    %s13 = sphi 0, %s17
    %p14 = scmp.ge.s32.totalorder %s13, 4
    %s23 = sphi 0, %s25
    %s26 = sphi 0, %s23
    %s27 = sphi 0, %s26
    %s43 = sphi 0, %s27
    %s47 = sphi 0, %s47
    %s49 = sphi 0, %s47
    %s50 = sphi 0, %s49
    %s64 = sphi 0, %s50
    %s68 = sphi 0, %s68
    %s70 = sphi 0, %s68
    %s71 = sphi 0, %s70
    %s85 = sphi 0, %s71
    %s89 = sphi 0, %s89
    %s91 = sphi 0, %s89
    %s92 = sphi 0, %s91
    %s106 = sphi 0, %s92
    %s110 = sphi 0, %s110
    %s112 = sphi 0, %s110
    %s113 = sphi 0, %s112
    %s127 = sphi 0, %s113
    %s131 = sphi 0, %s131
    %s133 = sphi 0, %s131
    %s134 = sphi 0, %s133
    %s148 = sphi 0, %s134
    %s152 = sphi 0, %s152
    %s154 = sphi 0, %s152
    %s155 = sphi 0, %s154
    %s169 = sphi 0, %s155
    %s175 = sphi 0, %s177
    %s178 = sphi 0, %s175
    %s179 = sphi 0, %s178
    %s195 = sphi 0, %s179
  $region4: #{qnet_forward.1} parent=0 // loop_header_branch
    %16 = sbr.rel (%p14) target = $region8
  $region5: #{qnet_forward.1} parent=0 // loop_body
    %s18 = ssub.s32 %s13, 1
    %s19 = ssub.s32 %s13, 2
    %s20 = sadd.s32 %s13, 1
    %s21 = ssub.s32 %s13, %s20
    %p22 = scmp.eq.s32.totalorder %s21, 0
    %s24 = sadd.s32 %s23, 1
    %s25 = scalar_select %p22, %s23, %s24
    %p28 = pneg %p22
    %p29 = scmp.eq.s32.totalorder %s13, 1
    %p30 = por %p28, %p29
    %p31 = scmp.ne.s32.totalorder %s23, %s26
    %p32 = scmp.eq.s32.totalorder %s13, 0
    %p33 = por %p31, %p32
    %p34 = scmp.ne.s32.totalorder %s23, %s26
    %p35 = scmp.eq.s32.totalorder %s18, 1
    %p36 = por %p34, %p35
    %p37 = scmp.ne.s32.totalorder %s26, %s27
    %p38 = scmp.eq.s32.totalorder %s18, 0
    %p39 = por %p37, %p38
    %p40 = scmp.ne.s32.totalorder %s26, %s27
    %p41 = scmp.eq.s32.totalorder %s19, 1
    %p42 = por %p40, %p41
    %p44 = scmp.ne.s32.totalorder %s27, %s43
    %p45 = scmp.eq.s32.totalorder %s19, 0
    %p46 = por %p44, %p45
    %s48 = sadd.s32 %s47, 1
    %p51 = scmp.eq.s32.totalorder %s13, 1
    %p52 = scmp.ne.s32.totalorder %s47, %s49
    %p53 = scmp.eq.s32.totalorder %s13, 0
    %p54 = por %p52, %p53
    %p55 = scmp.ne.s32.totalorder %s47, %s49
    %p56 = scmp.eq.s32.totalorder %s18, 1
    %p57 = por %p55, %p56
    %p58 = scmp.ne.s32.totalorder %s49, %s50
    %p59 = scmp.eq.s32.totalorder %s18, 0
    %p60 = por %p58, %p59
    %p61 = scmp.ne.s32.totalorder %s49, %s50
    %p62 = scmp.eq.s32.totalorder %s19, 1
    %p63 = por %p61, %p62
    %p65 = scmp.ne.s32.totalorder %s50, %s64
    %p66 = scmp.eq.s32.totalorder %s19, 0
    %p67 = por %p65, %p66
    %s69 = sadd.s32 %s68, 1
    %p72 = scmp.eq.s32.totalorder %s13, 1
    %p73 = scmp.ne.s32.totalorder %s68, %s70
    %p74 = scmp.eq.s32.totalorder %s13, 0
    %p75 = por %p73, %p74
    %p76 = scmp.ne.s32.totalorder %s68, %s70
    %p77 = scmp.eq.s32.totalorder %s18, 1
    %p78 = por %p76, %p77
    %p79 = scmp.ne.s32.totalorder %s70, %s71
    %p80 = scmp.eq.s32.totalorder %s18, 0
    %p81 = por %p79, %p80
    %p82 = scmp.ne.s32.totalorder %s70, %s71
    %p83 = scmp.eq.s32.totalorder %s19, 1
    %p84 = por %p82, %p83
    %p86 = scmp.ne.s32.totalorder %s71, %s85
    %p87 = scmp.eq.s32.totalorder %s19, 0
    %p88 = por %p86, %p87
    %s90 = sadd.s32 %s89, 1
    %p93 = scmp.eq.s32.totalorder %s13, 1
    %p94 = scmp.ne.s32.totalorder %s89, %s91
    %p95 = scmp.eq.s32.totalorder %s13, 0
    %p96 = por %p94, %p95
    %p97 = scmp.ne.s32.totalorder %s89, %s91
    %p98 = scmp.eq.s32.totalorder %s18, 1
    %p99 = por %p97, %p98
    %p100 = scmp.ne.s32.totalorder %s91, %s92
    %p101 = scmp.eq.s32.totalorder %s18, 0
    %p102 = por %p100, %p101
    %p103 = scmp.ne.s32.totalorder %s91, %s92
    %p104 = scmp.eq.s32.totalorder %s19, 1
    %p105 = por %p103, %p104
    %p107 = scmp.ne.s32.totalorder %s92, %s106
    %p108 = scmp.eq.s32.totalorder %s19, 0
    %p109 = por %p107, %p108
    %s111 = sadd.s32 %s110, 1
    %p114 = scmp.eq.s32.totalorder %s13, 1
    %p115 = scmp.ne.s32.totalorder %s110, %s112
    %p116 = scmp.eq.s32.totalorder %s13, 0
    %p117 = por %p115, %p116
    %p118 = scmp.ne.s32.totalorder %s110, %s112
    %p119 = scmp.eq.s32.totalorder %s18, 1
    %p120 = por %p118, %p119
    %p121 = scmp.ne.s32.totalorder %s112, %s113
    %p122 = scmp.eq.s32.totalorder %s18, 0
    %p123 = por %p121, %p122
    %p124 = scmp.ne.s32.totalorder %s112, %s113
    %p125 = scmp.eq.s32.totalorder %s19, 1
    %p126 = por %p124, %p125
    %p128 = scmp.ne.s32.totalorder %s113, %s127
    %p129 = scmp.eq.s32.totalorder %s19, 0
    %p130 = por %p128, %p129
    %s132 = sadd.s32 %s131, 1
    %p135 = scmp.eq.s32.totalorder %s13, 1
    %p136 = scmp.ne.s32.totalorder %s131, %s133
    %p137 = scmp.eq.s32.totalorder %s13, 0
    %p138 = por %p136, %p137
    %p139 = scmp.ne.s32.totalorder %s131, %s133
    %p140 = scmp.eq.s32.totalorder %s18, 1
    %p141 = por %p139, %p140
    %p142 = scmp.ne.s32.totalorder %s133, %s134
    %p143 = scmp.eq.s32.totalorder %s18, 0
    %p144 = por %p142, %p143
    %p145 = scmp.ne.s32.totalorder %s133, %s134
    %p146 = scmp.eq.s32.totalorder %s19, 1
    %p147 = por %p145, %p146
    %p149 = scmp.ne.s32.totalorder %s134, %s148
    %p150 = scmp.eq.s32.totalorder %s19, 0
    %p151 = por %p149, %p150
    %s153 = sadd.s32 %s152, 1
    %p156 = scmp.eq.s32.totalorder %s13, 1
    %p157 = scmp.ne.s32.totalorder %s152, %s154
    %p158 = scmp.eq.s32.totalorder %s13, 0
    %p159 = por %p157, %p158
    %p160 = scmp.ne.s32.totalorder %s152, %s154
    %p161 = scmp.eq.s32.totalorder %s18, 1
    %p162 = por %p160, %p161
    %p163 = scmp.ne.s32.totalorder %s154, %s155
    %p164 = scmp.eq.s32.totalorder %s18, 0
    %p165 = por %p163, %p164
    %p166 = scmp.ne.s32.totalorder %s154, %s155
    %p167 = scmp.eq.s32.totalorder %s19, 1
    %p168 = por %p166, %p167
    %p170 = scmp.ne.s32.totalorder %s155, %s169
    %p171 = scmp.eq.s32.totalorder %s19, 0
    %p172 = por %p170, %p171
    %s173 = ssub.s32 %s13, %s20
    %p174 = scmp.eq.s32.totalorder %s173, 0
    %s176 = sadd.s32 %s175, 1
    %s177 = scalar_select %p174, %s175, %s176
    %p180 = pneg %p174
    %p181 = scmp.eq.s32.totalorder %s13, 1
    %p182 = por %p180, %p181
    %p183 = scmp.ne.s32.totalorder %s175, %s178
    %p184 = scmp.eq.s32.totalorder %s13, 0
    %p185 = por %p183, %p184
    %p186 = scmp.ne.s32.totalorder %s175, %s178
    %p187 = scmp.eq.s32.totalorder %s18, 1
    %p188 = por %p186, %p187
    %p189 = scmp.ne.s32.totalorder %s178, %s179
    %p190 = scmp.eq.s32.totalorder %s18, 0
    %p191 = por %p189, %p190
    %p192 = scmp.ne.s32.totalorder %s178, %s179
    %p193 = scmp.eq.s32.totalorder %s19, 1
    %p194 = por %p192, %p193
    %p196 = scmp.ne.s32.totalorder %s179, %s195
    %p197 = scmp.eq.s32.totalorder %s19, 0
    %p198 = por %p196, %p197
    %p199 = scmp.le.s32.totalorder 1, %s13
    %p200 = scmp.lt.s32.totalorder %s13, 3
    %p201 = pnand %p199, %p200
    %p202 = pneg %p201
    // Predicated region
    $region9: #{qnet_forward.1} parent=5 // pred_check
      _
    $region10: #{qnet_forward.1} parent=5 // pred_check_branch
      %204 = sbr.rel (%p201) target = $region12
    $region11: #{qnet_forward.1} parent=5 // pred_region
      %s205 = ssub.s32 %s13, 1
      // Predicated region
      $region13: #{qnet_forward.1} parent=11 // pred_check
        %p206 = pneg %p60
      $region14: #{qnet_forward.1} parent=11 // pred_check_branch
        %208 = sbr.rel (%p206) target = $region16
      $region15: #{qnet_forward.1} parent=11 // pred_region
        _
      $region16: #{qnet_forward.1} parent=11 // pred_fallthru
        _
      // Predicated region
      $region17: #{qnet_forward.1} parent=11 // pred_check
        %p209 = pneg %p81
      $region18: #{qnet_forward.1} parent=11 // pred_check_branch
        %211 = sbr.rel (%p209) target = $region20
      $region19: #{qnet_forward.1} parent=11 // pred_region
        _
      $region20: #{qnet_forward.1} parent=11 // pred_fallthru
        _
      // Predicated region
      $region21: #{qnet_forward.1} parent=11 // pred_check
        %p212 = pneg %p102
      $region22: #{qnet_forward.1} parent=11 // pred_check_branch
        %214 = sbr.rel (%p212) target = $region24
      $region23: #{qnet_forward.1} parent=11 // pred_region
        _
      $region24: #{qnet_forward.1} parent=11 // pred_fallthru
        _
      // Predicated region
      $region25: #{qnet_forward.1} parent=11 // pred_check
        %p215 = pneg %p123
      $region26: #{qnet_forward.1} parent=11 // pred_check_branch
        %217 = sbr.rel (%p215) target = $region28
      $region27: #{qnet_forward.1} parent=11 // pred_region
        _
      $region28: #{qnet_forward.1} parent=11 // pred_fallthru
        _
      // Predicated region
      $region29: #{qnet_forward.1} parent=11 // pred_check
        %p218 = pneg %p144
      $region30: #{qnet_forward.1} parent=11 // pred_check_branch
        %220 = sbr.rel (%p218) target = $region32
      $region31: #{qnet_forward.1} parent=11 // pred_region
        _
      $region32: #{qnet_forward.1} parent=11 // pred_fallthru
        _
      // Predicated region
      $region33: #{qnet_forward.1} parent=11 // pred_check
        %p221 = pneg %p165
      $region34: #{qnet_forward.1} parent=11 // pred_check_branch
        %223 = sbr.rel (%p221) target = $region36
      $region35: #{qnet_forward.1} parent=11 // pred_region
        _
      $region36: #{qnet_forward.1} parent=11 // pred_fallthru
        _
    $region12: #{qnet_forward.1} parent=5 // pred_fallthru
      _
    %p224 = scmp.lt.s32.totalorder %s13, 2
    // Predicated region
    $region37: #{qnet_forward.1} parent=5 // pred_check
      %p225 = pneg %p224
    $region38: #{qnet_forward.1} parent=5 // pred_check_branch
      %227 = sbr.rel (%p225) target = $region40
    $region39: #{qnet_forward.1} parent=5 // pred_region
      // Predicated region
      $region41: #{qnet_forward.1} parent=39 // pred_check
        %p228 = pneg %p33
      $region42: #{qnet_forward.1} parent=39 // pred_check_branch
        %230 = sbr.rel (%p228) target = $region44
      $region43: #{qnet_forward.1} parent=39 // pred_region
        %s231 = smul.u32 2, %s13
        %p232 = scmp.lt.s32.totalorder %s231, 3
        %s233 = scalar_select %p232, %s231, 3
        %s234 = smul.addr %s233, 8
        %s235 = scalar_lea.vmem %s0, %s234
        %s236 = smul.u32 2, %s13
      $region44: #{qnet_forward.1} parent=39 // pred_fallthru
        _
    $region40: #{qnet_forward.1} parent=5 // pred_fallthru
      _
    %p237 = scmp.le.s32.totalorder 1, %s13
    %p238 = scmp.lt.s32.totalorder %s13, 3
    %p239 = pnand %p237, %p238
    %p240 = pneg %p239
    // Predicated region
    $region45: #{qnet_forward.1} parent=5 // pred_check
      _
    $region46: #{qnet_forward.1} parent=5 // pred_check_branch
      %242 = sbr.rel (%p239) target = $region48
    $region47: #{qnet_forward.1} parent=5 // pred_region
      %s243 = ssub.s32 %s13, 1
      %s244 = smul.u32 2, %s18
      %p245 = scmp.lt.s32.totalorder %s244, 3
      %s246 = scalar_select %p245, %s244, 3
      %s247 = smul.addr %s246, 8
      %s248 = scalar_lea.vmem %s0, %s247
      %p249 = pneg %p39
      %p250 = pneg %p36
      %p251 = pneg %p60
      %p252 = pneg %p57
      %p253 = pneg %p81
      %p254 = pneg %p78
      %p255 = pneg %p102
      %p256 = pneg %p99
      %p257 = pneg %p123
      %p258 = pneg %p120
      %p259 = pneg %p144
      %p260 = pneg %p141
      %p261 = pneg %p165
      %p262 = pneg %p162
      %p263 = pneg %p191
      %p264 = pneg %p188
      %s265 = smul.u32 2, %s18
      %p266 = scmp.lt.s32.totalorder %s265, 3
      %s267 = scalar_select %p266, %s265, 3
      %s268 = smul.addr %s267, 8
      %s269 = scalar_lea.vmem %s7, %s268
      %s270 = smul.u32 2, %s18
      %p271 = scmp.lt.s32.totalorder %s270, 3
      %s272 = scalar_select %p271, %s270, 3
      %s273 = smul.addr %s272, 8
      %s274 = scalar_lea.vmem %s0, %s273
      %s275 = smul.u32 2, %s18
      %s276 = smul.u32 2, %s18
      %p277 = scmp.lt.s32.totalorder %s276, 3
      %s278 = scalar_select %p277, %s276, 3
      %s279 = smul.addr %s278, 8
      %s280 = scalar_lea.vmem %s7, %s279
      %s281 = smul.u32 2, %s18
      %v283 = vld [vmem:[%s274] sm:$0xff]
      %v284 = vld [vmem:[%s274 + $0x8] sm:$0xff]
      %v285 = vpack.c.bf16 %v284, %v283
      %v286 = vld [vmem:[%s1] sm:$0xf]
      %v287 = vld [vmem:[%s2] sm:$0x3]
      %v289 = vlaneseq
      %v290 = vshrl.u32 %v289, 7
      %v291 = vsub.s32 0, %v290
      %v292 = vrot.slane %v287, %v291
      %v293 = vlaneseq
      %v294 = vshrl.u32 %v293, 7
      %v295 = vsub.s32 1, %v294
      %v296 = vrot.slane %v287, %v295
      %v301 = vunpack.c.l.s4 1983009808
      %v302 = vunpack.c.0.s8 %v301
      %v303 = vlaneseq
      %v304 = vshrl.u32 %v303, 7
      %v305 = vsub.s32 %v302, %v304
      %v306 = vrot.slane %v286, %v305
      %v307 = vcombine.high %v306, %v306
      %vm308 = vcmask 31744
      %v310 = vsel %vm308, %v285, 0
      %vm312 = vcmask 1041408
      %v314 = vsel %vm312, %v306, 0
      %v317 = vsel %vm312, %v307, 0
      %319 = vmatprep.subr.bf16.mxu0 0
      %320 = vmatpush1.bf16.msra.mxu0 0
      %321 = vmatprep.subr.bf16.mxu0 0
      %322 = vmatpush1.bf16.msra.mxu0 0
      %323 = vmatprep.subr.bf16.mxu0 0
      %324 = vmatpush1.bf16.msra.mxu0 0
      %325 = vmatprep.subr.bf16.mxu0 0
      %326 = vmatpush1.bf16.msra.mxu0 0
      %327 = vmatprep.subr.bf16.mxu0 0
      %328 = vmatpush1.bf16.msra.mxu0 0
      %329 = vmatprep.subr.bf16.mxu0 0
      %330 = vmatpush1.bf16.msra.mxu0 0
      %331 = vmatprep.subr.bf16.mxu0 0
      %332 = vmatpush1.bf16.msra.mxu0 0
      %333 = vmatprep.subr.bf16.mxu0 %v317
      %334 = vmatpush1.bf16.msra.mxu0 %v314
      %335 = vmatprep.subr.bf16.mxu0 0
      %336 = vmatpush2.bf16.msra.mxu0 0
      %337 = vmatprep.subr.bf16.mxu0 0
      %338 = vmatpush2.bf16.msra.mxu0 0
      %339 = vmatprep.subr.bf16.mxu0 0
      %340 = vmatpush2.bf16.msra.mxu0 0
      %341 = vmatprep.subr.bf16.mxu0 0
      %342 = vmatpush2.bf16.msra.mxu0 0
      %343 = vmatprep.subr.bf16.mxu0 0
      %344 = vmatpush2.bf16.msra.mxu0 0
      %345 = vmatprep.subr.bf16.mxu0 0
      %346 = vmatpush2.bf16.msra.mxu0 0
      %347 = vmatprep.subr.bf16.mxu0 0
      %348 = vmatpush2.bf16.msra.mxu0 0
      %349 = vmatprep.subr.bf16.mxu0 0
      %350 = vmatpush2.bf16.msra.mxu0 0
      %351 = vmatprep.mubr.bf16.mxu0 0
      %352 = vmatmul.mubr.bf16.gmra.mxu0 %v310
      %v353 = vpop.f32.mrf.mxu0
      %v354 = vadd.f32 %v292, %v353
      %v355 = vpop.f32.mrf.mxu0
      %v356 = vadd.f32 %v296, %v355
      %v357 = vpop.f32.mrf.mxu0
      %v358 = vadd.f32 %v292, %v357
      %v359 = vpop.f32.mrf.mxu0
      %v360 = vadd.f32 %v296, %v359
      %361 = vdwg.mxu0
      %v362 = vmax.f32 %v354, 0.0
      %v363 = vmax.f32 %v356, 0.0
      %v364 = vmax.f32 %v358, 0.0
      %v365 = vmax.f32 %v360, 0.0
      %v366 = vpack.c.bf16 %v364, %v362
      %v367 = vpack.c.bf16 %v365, %v363
      %v368 = vld [vmem:[%s3] sm:$0xff]
      %v369 = vld [vmem:[%s3 + $0x8] sm:$0xff]
      %v370 = vld [vmem:[%s3 + $0x10] sm:$0xff]
      %v371 = vld [vmem:[%s3 + $0x18] sm:$0xff]
      %v372 = vld [vmem:[%s3 + $0x20] sm:$0xff]
      %v373 = vld [vmem:[%s3 + $0x28] sm:$0xff]
      %v374 = vld [vmem:[%s3 + $0x30] sm:$0xff]
      %v375 = vld [vmem:[%s3 + $0x38] sm:$0xff]
      %v376 = vld [vmem:[%s3 + $0x40] sm:$0xff]
      %v377 = vld [vmem:[%s3 + $0x48] sm:$0xff]
      %v378 = vld [vmem:[%s3 + $0x50] sm:$0xff]
      %v379 = vld [vmem:[%s3 + $0x58] sm:$0xff]
      %v380 = vld [vmem:[%s3 + $0x60] sm:$0xff]
      %v381 = vld [vmem:[%s3 + $0x68] sm:$0xff]
      %v382 = vld [vmem:[%s3 + $0x70] sm:$0xff]
      %v383 = vld [vmem:[%s3 + $0x78] sm:$0xff]
      %v384 = vld [vmem:[%s3 + $0x80] sm:$0xff]
      %v385 = vld [vmem:[%s3 + $0x88] sm:$0xff]
      %v386 = vld [vmem:[%s3 + $0x90] sm:$0xff]
      %v387 = vld [vmem:[%s3 + $0x98] sm:$0xff]
      %v388 = vld [vmem:[%s3 + $0xa0] sm:$0xff]
      %v389 = vld [vmem:[%s3 + $0xa8] sm:$0xff]
      %v390 = vld [vmem:[%s3 + $0xb0] sm:$0xff]
      %v391 = vld [vmem:[%s3 + $0xb8] sm:$0xff]
      %v392 = vld [vmem:[%s3 + $0xc0] sm:$0xff]
      %v393 = vld [vmem:[%s3 + $0xc8] sm:$0xff]
      %v394 = vld [vmem:[%s3 + $0xd0] sm:$0xff]
      %v395 = vld [vmem:[%s3 + $0xd8] sm:$0xff]
      %v396 = vld [vmem:[%s3 + $0xe0] sm:$0xff]
      %v397 = vld [vmem:[%s3 + $0xe8] sm:$0xff]
      %v398 = vld [vmem:[%s3 + $0xf0] sm:$0xff]
      %v399 = vld [vmem:[%s3 + $0xf8] sm:$0xff]
      %v400 = vld [vmem:[%s4] sm:$0x3]
      %v402 = vlaneseq
      %v403 = vshrl.u32 %v402, 7
      %v404 = vsub.s32 0, %v403
      %v405 = vrot.slane %v400, %v404
      %v406 = vlaneseq
      %v407 = vshrl.u32 %v406, 7
      %v408 = vsub.s32 1, %v407
      %v409 = vrot.slane %v400, %v408
      %v444 = vunpack.c.l.b16 %v368
      %v445 = vunpack.c.h.b16 %v368
      %v446 = vunpack.c.l.b16 %v369
      %v447 = vunpack.c.h.b16 %v369
      %v448 = vunpack.c.l.b16 %v370
      %v449 = vunpack.c.h.b16 %v370
      %v450 = vunpack.c.l.b16 %v371
      %v451 = vunpack.c.h.b16 %v371
      %v452 = vunpack.c.l.b16 %v372
      %v453 = vunpack.c.h.b16 %v372
      %v454 = vunpack.c.l.b16 %v373
      %v455 = vunpack.c.h.b16 %v373
      %v456 = vunpack.c.l.b16 %v374
      %v457 = vunpack.c.h.b16 %v374
      %v458 = vunpack.c.l.b16 %v375
      %v459 = vunpack.c.h.b16 %v375
      %v460 = vunpack.c.l.b16 %v376
      %v461 = vunpack.c.h.b16 %v376
      %v462 = vunpack.c.l.b16 %v377
      %v463 = vunpack.c.h.b16 %v377
      %v464 = vunpack.c.l.b16 %v378
      %v465 = vunpack.c.h.b16 %v378
      %v466 = vunpack.c.l.b16 %v379
      %v467 = vunpack.c.h.b16 %v379
      %v468 = vunpack.c.l.b16 %v380
      %v469 = vunpack.c.h.b16 %v380
      %v470 = vunpack.c.l.b16 %v381
      %v471 = vunpack.c.h.b16 %v381
      %v472 = vunpack.c.l.b16 %v382
      %v473 = vunpack.c.h.b16 %v382
      %v474 = vunpack.c.l.b16 %v383
      %v475 = vunpack.c.h.b16 %v383
      %v476 = vunpack.c.l.b16 %v384
      %v477 = vunpack.c.h.b16 %v384
      %v478 = vunpack.c.l.b16 %v385
      %v479 = vunpack.c.h.b16 %v385
      %v480 = vunpack.c.l.b16 %v386
      %v481 = vunpack.c.h.b16 %v386
      %v482 = vunpack.c.l.b16 %v387
      %v483 = vunpack.c.h.b16 %v387
      %v484 = vunpack.c.l.b16 %v388
      %v485 = vunpack.c.h.b16 %v388
      %v486 = vunpack.c.l.b16 %v389
      %v487 = vunpack.c.h.b16 %v389
      %v488 = vunpack.c.l.b16 %v390
      %v489 = vunpack.c.h.b16 %v390
      %v490 = vunpack.c.l.b16 %v391
      %v491 = vunpack.c.h.b16 %v391
      %v492 = vunpack.c.l.b16 %v392
      %v493 = vunpack.c.h.b16 %v392
      %v494 = vunpack.c.l.b16 %v393
      %v495 = vunpack.c.h.b16 %v393
      %v496 = vunpack.c.l.b16 %v394
      %v497 = vunpack.c.h.b16 %v394
      %v498 = vunpack.c.l.b16 %v395
      %v499 = vunpack.c.h.b16 %v395
      %v500 = vunpack.c.l.b16 %v396
      %v501 = vunpack.c.h.b16 %v396
      %v502 = vunpack.c.l.b16 %v397
      %v503 = vunpack.c.h.b16 %v397
      %v504 = vunpack.c.l.b16 %v398
      %v505 = vunpack.c.h.b16 %v398
      %v506 = vunpack.c.l.b16 %v399
      %v507 = vunpack.c.h.b16 %v399
      %v508 = vpack.c.b16 %v446, %v444
      %v509 = vpack.c.b16 %v447, %v445
      %v510 = vpack.c.b16 %v450, %v448
      %v511 = vpack.c.b16 %v451, %v449
      %v512 = vpack.c.b16 %v454, %v452
      %v513 = vpack.c.b16 %v455, %v453
      %v514 = vpack.c.b16 %v458, %v456
      %v515 = vpack.c.b16 %v459, %v457
      %v516 = vpack.c.b16 %v462, %v460
      %v517 = vpack.c.b16 %v463, %v461
      %v518 = vpack.c.b16 %v466, %v464
      %v519 = vpack.c.b16 %v467, %v465
      %v520 = vpack.c.b16 %v470, %v468
      %v521 = vpack.c.b16 %v471, %v469
      %v522 = vpack.c.b16 %v474, %v472
      %v523 = vpack.c.b16 %v475, %v473
      %v524 = vpack.c.b16 %v478, %v476
      %v525 = vpack.c.b16 %v479, %v477
      %v526 = vpack.c.b16 %v482, %v480
      %v527 = vpack.c.b16 %v483, %v481
      %v528 = vpack.c.b16 %v486, %v484
      %v529 = vpack.c.b16 %v487, %v485
      %v530 = vpack.c.b16 %v490, %v488
      %v531 = vpack.c.b16 %v491, %v489
      %v532 = vpack.c.b16 %v494, %v492
      %v533 = vpack.c.b16 %v495, %v493
      %v534 = vpack.c.b16 %v498, %v496
      %v535 = vpack.c.b16 %v499, %v497
      %v536 = vpack.c.b16 %v502, %v500
      %v537 = vpack.c.b16 %v503, %v501
      %v538 = vpack.c.b16 %v506, %v504
      %v539 = vpack.c.b16 %v507, %v505
      %572 = vmatprep.subr.bf16.mxu0 %v523
      %573 = vmatpush1.bf16.msra.mxu0 %v522
      %574 = vmatprep.subr.bf16.mxu0 %v521
      %575 = vmatpush1.bf16.msra.mxu0 %v520
      %576 = vmatprep.subr.bf16.mxu0 %v519
      %577 = vmatpush1.bf16.msra.mxu0 %v518
      %578 = vmatprep.subr.bf16.mxu0 %v517
      %579 = vmatpush1.bf16.msra.mxu0 %v516
      %580 = vmatprep.subr.bf16.mxu0 %v515
      %581 = vmatpush1.bf16.msra.mxu0 %v514
      %582 = vmatprep.subr.bf16.mxu0 %v513
      %583 = vmatpush1.bf16.msra.mxu0 %v512
      %584 = vmatprep.subr.bf16.mxu0 %v511
      %585 = vmatpush1.bf16.msra.mxu0 %v510
      %586 = vmatprep.subr.bf16.mxu0 %v509
      %587 = vmatpush1.bf16.msra.mxu0 %v508
      %588 = vmatprep.subr.bf16.mxu0 %v539
      %589 = vmatpush2.bf16.msra.mxu0 %v538
      %590 = vmatprep.subr.bf16.mxu0 %v537
      %591 = vmatpush2.bf16.msra.mxu0 %v536
      %592 = vmatprep.subr.bf16.mxu0 %v535
      %593 = vmatpush2.bf16.msra.mxu0 %v534
      %594 = vmatprep.subr.bf16.mxu0 %v533
      %595 = vmatpush2.bf16.msra.mxu0 %v532
      %596 = vmatprep.subr.bf16.mxu0 %v531
      %597 = vmatpush2.bf16.msra.mxu0 %v530
      %598 = vmatprep.subr.bf16.mxu0 %v529
      %599 = vmatpush2.bf16.msra.mxu0 %v528
      %600 = vmatprep.subr.bf16.mxu0 %v527
      %601 = vmatpush2.bf16.msra.mxu0 %v526
      %602 = vmatprep.subr.bf16.mxu0 %v525
      %603 = vmatpush2.bf16.msra.mxu0 %v524
      %604 = vmatprep.mubr.bf16.mxu0 %v367
      %605 = vmatmul.mubr.bf16.gmra.mxu0 %v366
      %v606 = vpop.f32.mrf.mxu0
      %v607 = vadd.f32 %v405, %v606
      %v608 = vpop.f32.mrf.mxu0
      %v609 = vadd.f32 %v409, %v608
      %v610 = vpop.f32.mrf.mxu0
      %v611 = vadd.f32 %v405, %v610
      %v612 = vpop.f32.mrf.mxu0
      %v613 = vadd.f32 %v409, %v612
      %614 = vdwg.mxu0
      %v615 = vmax.f32 %v607, 0.0
      %v616 = vmax.f32 %v609, 0.0
      %v617 = vmax.f32 %v611, 0.0
      %v618 = vmax.f32 %v613, 0.0
      %v619 = vpack.c.bf16 %v617, %v615
      %v620 = vpack.c.bf16 %v618, %v616
      %v621 = vld [vmem:[%s5] sm:$0xf]
      %v622 = vld [vmem:[%s5 + $0x4] sm:$0xf]
      %v623 = vld [vmem:[%s5 + $0x8] sm:$0xf]
      %v624 = vld [vmem:[%s5 + $0xc] sm:$0xf]
      %v625 = vld [vmem:[%s5 + $0x10] sm:$0xf]
      %v626 = vld [vmem:[%s5 + $0x14] sm:$0xf]
      %v627 = vld [vmem:[%s5 + $0x18] sm:$0xf]
      %v628 = vld [vmem:[%s5 + $0x1c] sm:$0xf]
      %v629 = vld [vmem:[%s5 + $0x20] sm:$0xf]
      %v630 = vld [vmem:[%s5 + $0x24] sm:$0xf]
      %v631 = vld [vmem:[%s5 + $0x28] sm:$0xf]
      %v632 = vld [vmem:[%s5 + $0x2c] sm:$0xf]
      %v633 = vld [vmem:[%s5 + $0x30] sm:$0xf]
      %v634 = vld [vmem:[%s5 + $0x34] sm:$0xf]
      %v635 = vld [vmem:[%s5 + $0x38] sm:$0xf]
      %v636 = vld [vmem:[%s5 + $0x3c] sm:$0xf]
      %v637 = vld [vmem:[%s5 + $0x40] sm:$0xf]
      %v638 = vld [vmem:[%s5 + $0x44] sm:$0xf]
      %v639 = vld [vmem:[%s5 + $0x48] sm:$0xf]
      %v640 = vld [vmem:[%s5 + $0x4c] sm:$0xf]
      %v641 = vld [vmem:[%s5 + $0x50] sm:$0xf]
      %v642 = vld [vmem:[%s5 + $0x54] sm:$0xf]
      %v643 = vld [vmem:[%s5 + $0x58] sm:$0xf]
      %v644 = vld [vmem:[%s5 + $0x5c] sm:$0xf]
      %v645 = vld [vmem:[%s5 + $0x60] sm:$0xf]
      %v646 = vld [vmem:[%s5 + $0x64] sm:$0xf]
      %v647 = vld [vmem:[%s5 + $0x68] sm:$0xf]
      %v648 = vld [vmem:[%s5 + $0x6c] sm:$0xf]
      %v649 = vld [vmem:[%s5 + $0x70] sm:$0xf]
      %v650 = vld [vmem:[%s5 + $0x74] sm:$0xf]
      %v651 = vld [vmem:[%s5 + $0x78] sm:$0xf]
      %v652 = vld [vmem:[%s5 + $0x7c] sm:$0xf]
      %v653 = vld [vmem:[%s6] sm:$0x1]
      %v655 = vlaneseq
      %v656 = vshrl.u32 %v655, 7
      %v657 = vsub.s32 0, %v656
      %v658 = vrot.slane %v653, %v657
      %v692 = vunpack.c.l.b16 %v621
      %v693 = vunpack.c.l.b16 %v622
      %v694 = vunpack.c.l.b16 %v623
      %v695 = vunpack.c.l.b16 %v624
      %v696 = vunpack.c.l.b16 %v625
      %v697 = vunpack.c.l.b16 %v626
      %v698 = vunpack.c.l.b16 %v627
      %v699 = vunpack.c.l.b16 %v628
      %v700 = vunpack.c.l.b16 %v629
      %v701 = vunpack.c.l.b16 %v630
      %v702 = vunpack.c.l.b16 %v631
      %v703 = vunpack.c.l.b16 %v632
      %v704 = vunpack.c.l.b16 %v633
      %v705 = vunpack.c.l.b16 %v634
      %v706 = vunpack.c.l.b16 %v635
      %v707 = vunpack.c.l.b16 %v636
      %v708 = vunpack.c.l.b16 %v637
      %v709 = vunpack.c.l.b16 %v638
      %v710 = vunpack.c.l.b16 %v639
      %v711 = vunpack.c.l.b16 %v640
      %v712 = vunpack.c.l.b16 %v641
      %v713 = vunpack.c.l.b16 %v642
      %v714 = vunpack.c.l.b16 %v643
      %v715 = vunpack.c.l.b16 %v644
      %v716 = vunpack.c.l.b16 %v645
      %v717 = vunpack.c.l.b16 %v646
      %v718 = vunpack.c.l.b16 %v647
      %v719 = vunpack.c.l.b16 %v648
      %v720 = vunpack.c.l.b16 %v649
      %v721 = vunpack.c.l.b16 %v650
      %v722 = vunpack.c.l.b16 %v651
      %v723 = vunpack.c.l.b16 %v652
      %v724 = vpack.c.b16 %v693, %v692
      %v725 = vpack.c.b16 %v695, %v694
      %v726 = vpack.c.b16 %v697, %v696
      %v727 = vpack.c.b16 %v699, %v698
      %v728 = vpack.c.b16 %v701, %v700
      %v729 = vpack.c.b16 %v703, %v702
      %v730 = vpack.c.b16 %v705, %v704
      %v731 = vpack.c.b16 %v707, %v706
      %v732 = vpack.c.b16 %v709, %v708
      %v733 = vpack.c.b16 %v711, %v710
      %v734 = vpack.c.b16 %v713, %v712
      %v735 = vpack.c.b16 %v715, %v714
      %v736 = vpack.c.b16 %v717, %v716
      %v737 = vpack.c.b16 %v719, %v718
      %v738 = vpack.c.b16 %v721, %v720
      %v739 = vpack.c.b16 %v723, %v722
      %756 = vmatprep.subr.bf16.mxu0 0
      %757 = vmatpush1.bf16.msra.mxu0 %v731
      %758 = vmatprep.subr.bf16.mxu0 0
      %759 = vmatpush1.bf16.msra.mxu0 %v730
      %760 = vmatprep.subr.bf16.mxu0 0
      %761 = vmatpush1.bf16.msra.mxu0 %v729
      %762 = vmatprep.subr.bf16.mxu0 0
      %763 = vmatpush1.bf16.msra.mxu0 %v728
      %764 = vmatprep.subr.bf16.mxu0 0
      %765 = vmatpush1.bf16.msra.mxu0 %v727
      %766 = vmatprep.subr.bf16.mxu0 0
      %767 = vmatpush1.bf16.msra.mxu0 %v726
      %768 = vmatprep.subr.bf16.mxu0 0
      %769 = vmatpush1.bf16.msra.mxu0 %v725
      %770 = vmatprep.subr.bf16.mxu0 0
      %771 = vmatpush1.bf16.msra.mxu0 %v724
      %772 = vmatprep.subr.bf16.mxu0 0
      %773 = vmatpush2.bf16.msra.mxu0 %v739
      %774 = vmatprep.subr.bf16.mxu0 0
      %775 = vmatpush2.bf16.msra.mxu0 %v738
      %776 = vmatprep.subr.bf16.mxu0 0
      %777 = vmatpush2.bf16.msra.mxu0 %v737
      %778 = vmatprep.subr.bf16.mxu0 0
      %779 = vmatpush2.bf16.msra.mxu0 %v736
      %780 = vmatprep.subr.bf16.mxu0 0
      %781 = vmatpush2.bf16.msra.mxu0 %v735
      %782 = vmatprep.subr.bf16.mxu0 0
      %783 = vmatpush2.bf16.msra.mxu0 %v734
      %784 = vmatprep.subr.bf16.mxu0 0
      %785 = vmatpush2.bf16.msra.mxu0 %v733
      %786 = vmatprep.subr.bf16.mxu0 0
      %787 = vmatpush2.bf16.msra.mxu0 %v732
      %788 = vmatprep.mubr.bf16.mxu0 %v620
      %789 = vmatmul.mubr.bf16.gmra.mxu0 %v619
      %v790 = vpop.f32.mrf.mxu0
      %v791 = vadd.f32 %v658, %v790
      %v792 = vpop.f32.mrf.mxu0
      %v793 = vpop.f32.mrf.mxu0
      %v794 = vadd.f32 %v658, %v793
      %v795 = vpop.f32.mrf.mxu0
      %796 = vdwg.mxu0
      %vm797 = vcmask 15360
      %798 = vst.msk [vmem:[%s280] sm:$0xff] %vm797, %v791
      %799 = vst.msk [vmem:[%s280 + $0x8] sm:$0xff] %vm797, %v794
      %s800 = smul.u32 2, %s18
      %p801 = scmp.lt.s32.totalorder %s800, 3
      %s802 = scalar_select %p801, %s800, 3
      %s803 = smul.addr %s802, 8
      %s804 = scalar_lea.vmem %s7, %s803
      // Predicated region
      $region49: #{qnet_forward.1} parent=47 // pred_check
        %p805 = pneg %p188
      $region50: #{qnet_forward.1} parent=47 // pred_check_branch
        %807 = sbr.rel (%p805) target = $region52
      $region51: #{qnet_forward.1} parent=47 // pred_region
        %s808 = smul.u32 2, %s18
      $region52: #{qnet_forward.1} parent=47 // pred_fallthru
        _
    $region48: #{qnet_forward.1} parent=5 // pred_fallthru
      _
    %p809 = scmp.le.s32.totalorder 2, %s13
    // Predicated region
    $region53: #{qnet_forward.1} parent=5 // pred_check
      %p810 = pneg %p809
    $region54: #{qnet_forward.1} parent=5 // pred_check_branch
      %812 = sbr.rel (%p810) target = $region56
    $region55: #{qnet_forward.1} parent=5 // pred_region
      %s813 = ssub.s32 %s13, 2
      // Predicated region
      $region57: #{qnet_forward.1} parent=55 // pred_check
        %p814 = pneg %p194
      $region58: #{qnet_forward.1} parent=55 // pred_check_branch
        %816 = sbr.rel (%p814) target = $region60
      $region59: #{qnet_forward.1} parent=55 // pred_region
        %s817 = smul.u32 2, %s19
        %p818 = scmp.lt.s32.totalorder %s817, 3
        %s819 = scalar_select %p818, %s817, 3
        %s820 = smul.addr %s819, 8
        %s821 = scalar_lea.vmem %s7, %s820
      $region60: #{qnet_forward.1} parent=55 // pred_fallthru
        _
    $region56: #{qnet_forward.1} parent=5 // pred_fallthru
      _
  $region6: #{qnet_forward.1} parent=0 // loop_footer
    %s17 = sadd.s32 1, %s13
  $region7: #{qnet_forward.1} parent=0 // loop_footer_branch
    %12 = sbr.rel target = $region3
  $region8: #{qnet_forward.1} parent=0 // loop_exit
    _

</llo_original>
